<compile_context>
chip_gen: v6e
topology: v6e:2x2x1
jax: 0.10.0
libtpu: 0.0.40
codegen_flags: <defaults>
</compile_context>

<pallas_src>
import jax
import jax.numpy as jnp
from jax.experimental import pallas as pl
from jax.experimental.pallas import tpu as pltpu


def sception_kernel(x_ref, wblk_ref, bblk_ref, wcomb_ref, bcomb_ref,
                    wfc2_ref, bfc2_ref, out_ref, flat_ref):
    f32 = jnp.float32
    x = x_ref[0]                          # (C*Bb, T), rows ordered (c, b)
    T = x.shape[-1]
    Bb = out_ref.shape[0]                 # batch elements in this block
    R = wblk_ref.shape[0] // Bb           # 3 * num_S conv "rows" (branch-major)

    # ---- [matmul 1] all conv branches, all batch rows, one MXU push ----
    y = jnp.dot(wblk_ref[...], x, preferred_element_type=f32) + bblk_ref[...]
    y = jnp.maximum(y, 0.0)               # (R*Bb, T), rows ordered (r, b)

    # ---- flatten (r, b, t) -> (b, r*T + t) via static slice copies ----
    # (avoids an in-kernel lane/sublane-merging reshape; 3S tiny block stores)
    for r in range(R):
        flat_ref[:, r * T:(r + 1) * T] = y[r * Bb:(r + 1) * Bb, :]

    # ---- [matmul 2] fused AvgPool + BatchNorm + fc1 (+ ReLU) ----
    # TODO(synk): nn.Dropout is identity here (inference semantics).
    h = jnp.dot(flat_ref[...], wcomb_ref[...], preferred_element_type=f32) + bcomb_ref[...]
    h = jnp.maximum(h, 0.0)               # (Bb, hidden)

    # ---- [matmul 3] fc2 + LogSoftmax(dim=1) ----
    logits = jnp.dot(h, wfc2_ref[...], preferred_element_type=f32) + bfc2_ref[...]
    m = jnp.max(logits, axis=-1, keepdims=True)
    lse = m + jnp.log(jnp.sum(jnp.exp(logits - m), axis=-1, keepdims=True))
    out_ref[...] = logits - lse


def _prepare_weights(p, C, T, block_b, eps=1e-5):
    """Host-side folding of conv/pool/BN/fc weights into the kernel layout."""
    f32 = jnp.float32
    S = p["conv1_w"].shape[0]
    C2 = p["conv2_w"].shape[1]
    Tp = T // 16
    H = p["fc1_w"].shape[0]

    # Combined conv weight over the 3 "height" outputs (branch-major rows):
    #   rows [0,S)   : Conv2d(1,S,(C,1))
    #   rows [S,2S)  : Conv2d(1,S,(C/2,1)) on channel rows [0, C/2)
    #   rows [2S,3S) : Conv2d(1,S,(C/2,1)) on channel rows [C/2, C)
    wcat = jnp.zeros((3 * S, C), f32)
    wcat = wcat.at[:S, :].set(p["conv1_w"])
    wcat = wcat.at[S:2 * S, :C2].set(p["conv2_w"])
    wcat = wcat.at[2 * S:, C2:].set(p["conv2_w"])
    bcat = jnp.concatenate([p["conv1_b"], p["conv2_b"], p["conv2_b"]])

    # Block-diagonal over the batch packed on sublanes: rows (r, b), cols (c, b).
    wblk = jnp.kron(wcat, jnp.eye(block_b, dtype=f32))      # (3S*Bb, C*Bb)
    bblk = jnp.repeat(bcat, block_b)[:, None]                # (3S*Bb, 1)

    # Fold AvgPool2d((1,16),16) + BatchNorm2d (inference) into fc1.
    scale = p["bn_gamma"] / jnp.sqrt(p["bn_var"] + eps)      # (S,)
    shift = p["bn_beta"] - p["bn_mean"] * scale              # (S,)
    pool = ((jnp.arange(T)[:, None] // 16) ==
            jnp.arange(Tp)[None, :]).astype(f32) / 16.0      # (T, Tp)
    # torch flatten order of the feature is (s, height/branch, tp)
    w1fc = p["fc1_w"].T.reshape(S, 3, Tp, H)                 # (S, 3, Tp, H)
    wcomb = jnp.einsum("tp,s,sbpj->bstj", pool, scale, w1fc).reshape(3 * S * T, H)
    bcomb = (p["fc1_b"] + jnp.einsum("s,sbpj->j", shift, w1fc))[None, :]

    return dict(wblk=wblk, bblk=bblk, wcomb=wcomb, bcomb=bcomb,
                wfc2=p["fc2_w"].T, bfc2=p["fc2_b"][None, :])


def sception_forward(x_nchw, params, *, block_b=None):
    """x_nchw: (B, 1, C, T) float32 -> (B, num_classes) log-probabilities."""
    B, _, C, T = x_nchw.shape
    if block_b is None:
        block_b = B            # collapse the grid: one step for the whole batch
    assert B % block_b == 0
    nb = B // block_b          # >1 only if you want a parallel batch axis (v7x)

    prep = _prepare_weights(params, C, T, block_b)
    num_classes = prep["wfc2"].shape[-1]

    # Layout: (nb, C*block_b, T), rows ordered (c, b); time on the lane axis.
    x = x_nchw[:, 0, :, :]
    xs = (x.reshape(nb, block_b, C, T)
           .transpose(0, 2, 1, 3)
           .reshape(nb, C * block_b, T))

    weights = [prep[k] for k in ("wblk", "bblk", "wcomb", "bcomb", "wfc2", "bfc2")]

    def wspec(a):
        return pl.BlockSpec(a.shape, lambda i, _nd=a.ndim: (0,) * _nd)

    out = pl.pallas_call(
        sception_kernel,
        out_shape=jax.ShapeDtypeStruct((B, num_classes), jnp.float32),
        grid=(nb,),
        in_specs=[pl.BlockSpec((1, C * block_b, T), lambda i: (i, 0, 0))] +
                 [wspec(a) for a in weights],
        out_specs=pl.BlockSpec((block_b, num_classes), lambda i: (i, 0)),
        scratch_shapes=[pltpu.VMEM((block_b, prep["wcomb"].shape[0]), jnp.float32)],
        compiler_params=pltpu.CompilerParams(dimension_semantics=("parallel",)),
    )(xs, *weights)
    return out


def init_params(key, C, T, num_S, hidden, num_classes):
    """Random parameters stored in torch-equivalent layouts."""
    assert C % 2 == 0 and T % 16 == 0
    C2, Tp = C // 2, T // 16
    f32 = jnp.float32
    ks = jax.random.split(key, 12)
    return dict(
        conv1_w=0.3 * jax.random.normal(ks[0], (num_S, C), f32),
        conv1_b=0.1 * jax.random.normal(ks[1], (num_S,), f32),
        conv2_w=0.3 * jax.random.normal(ks[2], (num_S, C2), f32),
        conv2_b=0.1 * jax.random.normal(ks[3], (num_S,), f32),
        bn_gamma=1.0 + 0.1 * jax.random.normal(ks[4], (num_S,), f32),
        bn_beta=0.1 * jax.random.normal(ks[5], (num_S,), f32),
        bn_mean=0.05 * jax.random.normal(ks[6], (num_S,), f32),
        bn_var=0.9 + 0.2 * jax.random.uniform(ks[7], (num_S,), f32),
        fc1_w=0.2 * jax.random.normal(ks[8], (hidden, num_S * 3 * Tp), f32),  # (out, in)
        fc1_b=0.1 * jax.random.normal(ks[9], (hidden,), f32),
        fc2_w=0.2 * jax.random.normal(ks[10], (num_classes, hidden), f32),    # (out, in)
        fc2_b=0.1 * jax.random.normal(ks[11], (num_classes,), f32),
    )


def sception_reference(x_nchw, p, eps=1e-5):
    """Pure-JAX, torch-faithful reference of the same forward pass."""
    x = x_nchw[:, 0]                                         # (B, C, T)
    B, C, T = x.shape
    C2, Tp = p["conv2_w"].shape[1], T // 16

    def pool16(y):                                           # AvgPool2d((1,16),16)
        return y.reshape(*y.shape[:-1], Tp, 16).mean(-1)

    y1 = jax.nn.relu(jnp.einsum("sc,bct->bst", p["conv1_w"], x)
                     + p["conv1_b"][None, :, None])
    y2a = jax.nn.relu(jnp.einsum("sc,bct->bst", p["conv2_w"], x[:, :C2])
                      + p["conv2_b"][None, :, None])
    y2b = jax.nn.relu(jnp.einsum("sc,bct->bst", p["conv2_w"], x[:, C2:])
                      + p["conv2_b"][None, :, None])
    feat = jnp.stack([pool16(y1), pool16(y2a), pool16(y2b)], axis=2)   # (B,S,3,Tp)
    scale = p["bn_gamma"] / jnp.sqrt(p["bn_var"] + eps)
    shift = p["bn_beta"] - p["bn_mean"] * scale
    feat = feat * scale[None, :, None, None] + shift[None, :, None, None]
    flat = feat.reshape(B, -1)
    h = jax.nn.relu(flat @ p["fc1_w"].T + p["fc1_b"])
    logits = h @ p["fc2_w"].T + p["fc2_b"]
    return jax.nn.log_softmax(logits, axis=-1)


if __name__ == "__main__":
    B, C, T = 2, 8, 64                      # input_size = (8, 64)
    num_S, hidden, num_classes = 4, 32, 3   # num_S, hiden, num_classes

    key = jax.random.PRNGKey(0)
    kx, kp = jax.random.split(key)
    x = jax.random.normal(kx, (B, 1, C, T), jnp.float32)
    params = init_params(kp, C, T, num_S, hidden, num_classes)

    out = sception_forward(x, params)
    out = jax.block_until_ready(out)

    ref = sception_reference(x, params)
    assert out.shape == (B, num_classes)
    assert jnp.allclose(out, ref, atol=1e-4, rtol=1e-4), (out, ref)
    print("KERNEL_OK")
</pallas_src>

<mosaic_0001>
module attributes {stable_mosaic.version = 11 : i64} {
  func.func @sception_kernel(%arg0: i32, %arg1: memref<1x16x64xf32, #tpu.memory_space<vmem>>, %arg2: memref<24x16xf32, #tpu.memory_space<vmem>>, %arg3: memref<24x1xf32, #tpu.memory_space<vmem>>, %arg4: memref<768x32xf32, #tpu.memory_space<vmem>>, %arg5: memref<1x32xf32, #tpu.memory_space<vmem>>, %arg6: memref<32x3xf32, #tpu.memory_space<vmem>>, %arg7: memref<1x3xf32, #tpu.memory_space<vmem>>, %arg8: memref<2x3xf32, #tpu.memory_space<vmem>>, %arg9: memref<2x768xf32, #tpu.memory_space<vmem>>) attributes {dimension_semantics = [#tpu.dimension_semantics<parallel>], iteration_bounds = array<i64: 1>, scalar_prefetch = 0 : i64, scratch_operands = 1 : i64, tpu.core_type = #tpu.core_type<tc>, window_params = [{transform_indices = @transform_0, window_bounds = array<i64: 1, 16, 64>}, {pipeline_mode = #tpu.pipeline_mode<synchronous>, transform_indices = @transform_1, window_bounds = array<i64: 24, 16>}, {pipeline_mode = #tpu.pipeline_mode<synchronous>, transform_indices = @transform_2, window_bounds = array<i64: 24, 1>}, {pipeline_mode = #tpu.pipeline_mode<synchronous>, transform_indices = @transform_3, window_bounds = array<i64: 768, 32>}, {pipeline_mode = #tpu.pipeline_mode<synchronous>, transform_indices = @transform_4, window_bounds = array<i64: 1, 32>}, {pipeline_mode = #tpu.pipeline_mode<synchronous>, transform_indices = @transform_5, window_bounds = array<i64: 32, 3>}, {pipeline_mode = #tpu.pipeline_mode<synchronous>, transform_indices = @transform_6, window_bounds = array<i64: 1, 3>}, {transform_indices = @transform_7, window_bounds = array<i64: 2, 3>}]} {
    %c0 = arith.constant 0 : index
    %c0_0 = arith.constant 0 : index
    %c0_1 = arith.constant 0 : index
    %0 = vector.load %arg1[%c0, %c0_0, %c0_1] : memref<1x16x64xf32, #tpu.memory_space<vmem>>, vector<1x16x64xf32>
    %1 = vector.shape_cast %0 : vector<1x16x64xf32> to vector<16x64xf32>
    %c0_2 = arith.constant 0 : index
    %c0_3 = arith.constant 0 : index
    %2 = vector.load %arg2[%c0_2, %c0_3] : memref<24x16xf32, #tpu.memory_space<vmem>>, vector<24x16xf32>
    %cst = arith.constant dense<0.000000e+00> : vector<24x64xf32>
    %3 = tpu.matmul %2, %1, %cst {dimension_numbers = #tpu.dot_dimension_numbers<[1], [0], [0], [1], [0, 0, 1, 1], [], []>} : vector<24x16xf32>, vector<16x64xf32>, vector<24x64xf32> -> vector<24x64xf32>
    %c0_4 = arith.constant 0 : index
    %c0_5 = arith.constant 0 : index
    %4 = vector.load %arg3[%c0_4, %c0_5] : memref<24x1xf32, #tpu.memory_space<vmem>>, vector<24x1xf32>
    %5 = vector.broadcast %4 : vector<24x1xf32> to vector<24x64xf32>
    %6 = arith.addf %3, %5 : vector<24x64xf32>
    %cst_6 = arith.constant 0.000000e+00 : f32
    %7 = vector.broadcast %cst_6 : f32 to vector<24x64xf32>
    %8 = arith.maximumf %6, %7 : vector<24x64xf32>
    %9 = vector.extract_strided_slice %8 {offsets = [0, 0], sizes = [2, 64], strides = [1, 1]} : vector<24x64xf32> to vector<2x64xf32>
    %c0_7 = arith.constant 0 : index
    %c0_8 = arith.constant 0 : index
    %10 = vector.load %arg9[%c0_7, %c0_8] : memref<2x768xf32, #tpu.memory_space<vmem>>, vector<2x64xf32>
    tpu.vector_store %arg9[%c0_7, %c0_8], %9 {strides = array<i32>} : memref<2x768xf32, #tpu.memory_space<vmem>>, vector<2x64xf32>,
    %11 = vector.extract_strided_slice %8 {offsets = [2, 0], sizes = [2, 64], strides = [1, 1]} : vector<24x64xf32> to vector<2x64xf32>
    %c0_9 = arith.constant 0 : index
    %c64 = arith.constant 64 : index
    %12 = vector.load %arg9[%c0_9, %c64] : memref<2x768xf32, #tpu.memory_space<vmem>>, vector<2x64xf32>
    tpu.vector_store %arg9[%c0_9, %c64], %11 {strides = array<i32>} : memref<2x768xf32, #tpu.memory_space<vmem>>, vector<2x64xf32>,
    %13 = vector.extract_strided_slice %8 {offsets = [4, 0], sizes = [2, 64], strides = [1, 1]} : vector<24x64xf32> to vector<2x64xf32>
    %c0_10 = arith.constant 0 : index
    %c128 = arith.constant 128 : index
    %14 = vector.load %arg9[%c0_10, %c128] : memref<2x768xf32, #tpu.memory_space<vmem>>, vector<2x64xf32>
    tpu.vector_store %arg9[%c0_10, %c128], %13 {strides = array<i32>} : memref<2x768xf32, #tpu.memory_space<vmem>>, vector<2x64xf32>,
    %15 = vector.extract_strided_slice %8 {offsets = [6, 0], sizes = [2, 64], strides = [1, 1]} : vector<24x64xf32> to vector<2x64xf32>
    %c0_11 = arith.constant 0 : index
    %c192 = arith.constant 192 : index
    %16 = vector.load %arg9[%c0_11, %c192] : memref<2x768xf32, #tpu.memory_space<vmem>>, vector<2x64xf32>
    tpu.vector_store %arg9[%c0_11, %c192], %15 {strides = array<i32>} : memref<2x768xf32, #tpu.memory_space<vmem>>, vector<2x64xf32>,
    %17 = vector.extract_strided_slice %8 {offsets = [8, 0], sizes = [2, 64], strides = [1, 1]} : vector<24x64xf32> to vector<2x64xf32>
    %c0_12 = arith.constant 0 : index
    %c256 = arith.constant 256 : index
    %18 = vector.load %arg9[%c0_12, %c256] : memref<2x768xf32, #tpu.memory_space<vmem>>, vector<2x64xf32>
    tpu.vector_store %arg9[%c0_12, %c256], %17 {strides = array<i32>} : memref<2x768xf32, #tpu.memory_space<vmem>>, vector<2x64xf32>,
    %19 = vector.extract_strided_slice %8 {offsets = [10, 0], sizes = [2, 64], strides = [1, 1]} : vector<24x64xf32> to vector<2x64xf32>
    %c0_13 = arith.constant 0 : index
    %c320 = arith.constant 320 : index
    %20 = vector.load %arg9[%c0_13, %c320] : memref<2x768xf32, #tpu.memory_space<vmem>>, vector<2x64xf32>
    tpu.vector_store %arg9[%c0_13, %c320], %19 {strides = array<i32>} : memref<2x768xf32, #tpu.memory_space<vmem>>, vector<2x64xf32>,
    %21 = vector.extract_strided_slice %8 {offsets = [12, 0], sizes = [2, 64], strides = [1, 1]} : vector<24x64xf32> to vector<2x64xf32>
    %c0_14 = arith.constant 0 : index
    %c384 = arith.constant 384 : index
    %22 = vector.load %arg9[%c0_14, %c384] : memref<2x768xf32, #tpu.memory_space<vmem>>, vector<2x64xf32>
    tpu.vector_store %arg9[%c0_14, %c384], %21 {strides = array<i32>} : memref<2x768xf32, #tpu.memory_space<vmem>>, vector<2x64xf32>,
    %23 = vector.extract_strided_slice %8 {offsets = [14, 0], sizes = [2, 64], strides = [1, 1]} : vector<24x64xf32> to vector<2x64xf32>
    %c0_15 = arith.constant 0 : index
    %c448 = arith.constant 448 : index
    %24 = vector.load %arg9[%c0_15, %c448] : memref<2x768xf32, #tpu.memory_space<vmem>>, vector<2x64xf32>
    tpu.vector_store %arg9[%c0_15, %c448], %23 {strides = array<i32>} : memref<2x768xf32, #tpu.memory_space<vmem>>, vector<2x64xf32>,
    %25 = vector.extract_strided_slice %8 {offsets = [16, 0], sizes = [2, 64], strides = [1, 1]} : vector<24x64xf32> to vector<2x64xf32>
    %c0_16 = arith.constant 0 : index
    %c512 = arith.constant 512 : index
    %26 = vector.load %arg9[%c0_16, %c512] : memref<2x768xf32, #tpu.memory_space<vmem>>, vector<2x64xf32>
    tpu.vector_store %arg9[%c0_16, %c512], %25 {strides = array<i32>} : memref<2x768xf32, #tpu.memory_space<vmem>>, vector<2x64xf32>,
    %27 = vector.extract_strided_slice %8 {offsets = [18, 0], sizes = [2, 64], strides = [1, 1]} : vector<24x64xf32> to vector<2x64xf32>
    %c0_17 = arith.constant 0 : index
    %c576 = arith.constant 576 : index
    %28 = vector.load %arg9[%c0_17, %c576] : memref<2x768xf32, #tpu.memory_space<vmem>>, vector<2x64xf32>
    tpu.vector_store %arg9[%c0_17, %c576], %27 {strides = array<i32>} : memref<2x768xf32, #tpu.memory_space<vmem>>, vector<2x64xf32>,
    %29 = vector.extract_strided_slice %8 {offsets = [20, 0], sizes = [2, 64], strides = [1, 1]} : vector<24x64xf32> to vector<2x64xf32>
    %c0_18 = arith.constant 0 : index
    %c640 = arith.constant 640 : index
    %30 = vector.load %arg9[%c0_18, %c640] : memref<2x768xf32, #tpu.memory_space<vmem>>, vector<2x64xf32>
    tpu.vector_store %arg9[%c0_18, %c640], %29 {strides = array<i32>} : memref<2x768xf32, #tpu.memory_space<vmem>>, vector<2x64xf32>,
    %31 = vector.extract_strided_slice %8 {offsets = [22, 0], sizes = [2, 64], strides = [1, 1]} : vector<24x64xf32> to vector<2x64xf32>
    %c0_19 = arith.constant 0 : index
    %c704 = arith.constant 704 : index
    %32 = vector.load %arg9[%c0_19, %c704] : memref<2x768xf32, #tpu.memory_space<vmem>>, vector<2x64xf32>
    tpu.vector_store %arg9[%c0_19, %c704], %31 {strides = array<i32>} : memref<2x768xf32, #tpu.memory_space<vmem>>, vector<2x64xf32>,
    %c0_20 = arith.constant 0 : index
    %c0_21 = arith.constant 0 : index
    %33 = vector.load %arg9[%c0_20, %c0_21] : memref<2x768xf32, #tpu.memory_space<vmem>>, vector<2x768xf32>
    %c0_22 = arith.constant 0 : index
    %c0_23 = arith.constant 0 : index
    %34 = vector.load %arg4[%c0_22, %c0_23] : memref<768x32xf32, #tpu.memory_space<vmem>>, vector<768x32xf32>
    %cst_24 = arith.constant dense<0.000000e+00> : vector<2x32xf32>
    %35 = tpu.matmul %33, %34, %cst_24 {dimension_numbers = #tpu.dot_dimension_numbers<[1], [0], [0], [1], [0, 0, 1, 1], [], []>} : vector<2x768xf32>, vector<768x32xf32>, vector<2x32xf32> -> vector<2x32xf32>
    %c0_25 = arith.constant 0 : index
    %c0_26 = arith.constant 0 : index
    %36 = vector.load %arg5[%c0_25, %c0_26] : memref<1x32xf32, #tpu.memory_space<vmem>>, vector<1x32xf32>
    %37 = vector.broadcast %36 : vector<1x32xf32> to vector<2x32xf32>
    %38 = arith.addf %35, %37 : vector<2x32xf32>
    %cst_27 = arith.constant 0.000000e+00 : f32
    %39 = vector.broadcast %cst_27 : f32 to vector<2x32xf32>
    %40 = arith.maximumf %38, %39 : vector<2x32xf32>
    %c0_28 = arith.constant 0 : index
    %c0_29 = arith.constant 0 : index
    %41 = vector.load %arg6[%c0_28, %c0_29] : memref<32x3xf32, #tpu.memory_space<vmem>>, vector<32x3xf32>
    %cst_30 = arith.constant dense<0.000000e+00> : vector<2x3xf32>
    %42 = tpu.matmul %40, %41, %cst_30 {dimension_numbers = #tpu.dot_dimension_numbers<[1], [0], [0], [1], [0, 0, 1, 1], [], []>} : vector<2x32xf32>, vector<32x3xf32>, vector<2x3xf32> -> vector<2x3xf32>
    %c0_31 = arith.constant 0 : index
    %c0_32 = arith.constant 0 : index
    %43 = vector.load %arg7[%c0_31, %c0_32] : memref<1x3xf32, #tpu.memory_space<vmem>>, vector<1x3xf32>
    %44 = vector.broadcast %43 : vector<1x3xf32> to vector<2x3xf32>
    %45 = arith.addf %42, %44 : vector<2x3xf32>
    %cst_33 = arith.constant dense<0xFF800000> : vector<2xf32>
    %46 = vector.multi_reduction <maximumf>, %45, %cst_33 [1] : vector<2x3xf32> to vector<2xf32>
    %47 = vector.shape_cast %46 : vector<2xf32> to vector<2x1xf32>
    %48 = vector.broadcast %47 : vector<2x1xf32> to vector<2x3xf32>
    %49 = arith.subf %45, %48 : vector<2x3xf32>
    %50 = math.exp %49 : vector<2x3xf32>
    %cst_34 = arith.constant dense<0.000000e+00> : vector<2xf32>
    %51 = vector.multi_reduction <add>, %50, %cst_34 [1] : vector<2x3xf32> to vector<2xf32>
    %52 = vector.shape_cast %51 : vector<2xf32> to vector<2x1xf32>
    %53 = math.log %52 : vector<2x1xf32>
    %54 = arith.addf %47, %53 : vector<2x1xf32>
    %55 = vector.broadcast %54 : vector<2x1xf32> to vector<2x3xf32>
    %56 = arith.subf %45, %55 : vector<2x3xf32>
    %c0_35 = arith.constant 0 : index
    %c0_36 = arith.constant 0 : index
    %57 = vector.load %arg8[%c0_35, %c0_36] : memref<2x3xf32, #tpu.memory_space<vmem>>, vector<2x3xf32>
    tpu.vector_store %arg8[%c0_35, %c0_36], %56 {strides = array<i32>} : memref<2x3xf32, #tpu.memory_space<vmem>>, vector<2x3xf32>,
    return
  }
  func.func @transform_0(%arg0: i32) -> (i32, i32, i32) {
    %c0_i32 = arith.constant 0 : i32
    %c0_i32_0 = arith.constant 0 : i32
    %c0_i32_1 = arith.constant 0 : i32
    return %arg0, %c0_i32, %c0_i32_0 : i32, i32, i32
  }
  func.func @transform_1(%arg0: i32) -> (i32, i32) {
    %c0_i32 = arith.constant 0 : i32
    %c0_i32_0 = arith.constant 0 : i32
    %c0_i32_1 = arith.constant 0 : i32
    return %c0_i32, %c0_i32_0 : i32, i32
  }
  func.func @transform_2(%arg0: i32) -> (i32, i32) {
    %c0_i32 = arith.constant 0 : i32
    %c0_i32_0 = arith.constant 0 : i32
    %c0_i32_1 = arith.constant 0 : i32
    return %c0_i32, %c0_i32_0 : i32, i32
  }
  func.func @transform_3(%arg0: i32) -> (i32, i32) {
    %c0_i32 = arith.constant 0 : i32
    %c0_i32_0 = arith.constant 0 : i32
    %c0_i32_1 = arith.constant 0 : i32
    return %c0_i32, %c0_i32_0 : i32, i32
  }
  func.func @transform_4(%arg0: i32) -> (i32, i32) {
    %c0_i32 = arith.constant 0 : i32
    %c0_i32_0 = arith.constant 0 : i32
    %c0_i32_1 = arith.constant 0 : i32
    return %c0_i32, %c0_i32_0 : i32, i32
  }
  func.func @transform_5(%arg0: i32) -> (i32, i32) {
    %c0_i32 = arith.constant 0 : i32
    %c0_i32_0 = arith.constant 0 : i32
    %c0_i32_1 = arith.constant 0 : i32
    return %c0_i32, %c0_i32_0 : i32, i32
  }
  func.func @transform_6(%arg0: i32) -> (i32, i32) {
    %c0_i32 = arith.constant 0 : i32
    %c0_i32_0 = arith.constant 0 : i32
    %c0_i32_1 = arith.constant 0 : i32
    return %c0_i32, %c0_i32_0 : i32, i32
  }
  func.func @transform_7(%arg0: i32) -> (i32, i32) {
    %c0_i32 = arith.constant 0 : i32
    %c0_i32_0 = arith.constant 0 : i32
    return %arg0, %c0_i32 : i32, i32
  }
}

</mosaic_0001>

<llo_original>
// kernel: tpu_custom_call.1
$region0: #{tpu_custom_call.1}
  #allocation0 [shape = 'u32[]', space=smem, size = 0x4, offset = 0x4, fixed_abs, tag = 'smem constant byte address 0x4 - core index']
  #allocation1 [shape = 'u32[144,128]{1,0:T(1,128)}', space=vmem, size = 0x12000, scoped, tag = 'internal scratch']
  #allocation2 [shape = 'f32[2,768]{1,0:T(2,128)}', space=vmem, size = 0x1800, scoped, tag = 'scratch operand']
  %s0 = inlined_call_operand.vmem [shape: f32[1,16,64], index: 0, kind: input, shape index: {}]
  %s1 = inlined_call_operand.vmem [shape: f32[24,16], index: 1, kind: input, shape index: {}]
  %s2 = inlined_call_operand.vmem [shape: f32[24,1], index: 2, kind: input, shape index: {}]
  %s3 = inlined_call_operand.vmem [shape: f32[768,32], index: 3, kind: input, shape index: {}]
  %s4 = inlined_call_operand.vmem [shape: f32[1,32], index: 4, kind: input, shape index: {}]
  %s5 = inlined_call_operand.vmem [shape: f32[32,3], index: 5, kind: input, shape index: {}]
  %s6 = inlined_call_operand.vmem [shape: f32[1,3], index: 6, kind: input, shape index: {}]
  %s7 = inlined_call_operand.hbm [shape: f32[2,3], index: 7, kind: output, shape index: {}]
  %s8 = sld [smem:[#allocation0]]
  $region38: #{tpu_custom_call.1} parent=0
    _
  %s10 = ssub.s32 1, %s8
  %s11 = scalar_select 0, %s10, %s8
  $region1: #{tpu_custom_call.1} parent=0
    #allocation3 [shape = 'u8[1024]{0}', space=vmem, size = 0x400, scoped, tag = 'output window, operand 0, single buffered']
    #allocation4 [shape = 's32[1]{0}', space=sflag, size = 0x4, scoped, tag = 'scoped memory for tpu_custom_call.1']
    %12 = vsyncpa [#allocation4], 0
    // Predicated region
    $region2: #{tpu_custom_call.1} parent=1 // pred_check
      _
    $region3: #{tpu_custom_call.1} parent=1 // pred_check_branch
      %14 = sbr.rel (0) target = $region5
    $region4: #{tpu_custom_call.1} parent=1 // pred_region
      _
    $region5: #{tpu_custom_call.1} parent=1 // pred_fallthru
      _
    // Predicated region
    $region6: #{tpu_custom_call.1} parent=1 // pred_check
      _
    $region7: #{tpu_custom_call.1} parent=1 // pred_check_branch
      %16 = sbr.rel (0) target = $region9
    $region8: #{tpu_custom_call.1} parent=1 // pred_region
      _
    $region9: #{tpu_custom_call.1} parent=1 // pred_fallthru
      _
    // Predicated region
    $region10: #{tpu_custom_call.1} parent=1 // pred_check
      _
    $region11: #{tpu_custom_call.1} parent=1 // pred_check_branch
      %18 = sbr.rel (0) target = $region13
    $region12: #{tpu_custom_call.1} parent=1 // pred_region
      _
    $region13: #{tpu_custom_call.1} parent=1 // pred_fallthru
      _
    // Predicated region
    $region14: #{tpu_custom_call.1} parent=1 // pred_check
      _
    $region15: #{tpu_custom_call.1} parent=1 // pred_check_branch
      %20 = sbr.rel (0) target = $region17
    $region16: #{tpu_custom_call.1} parent=1 // pred_region
      _
    $region17: #{tpu_custom_call.1} parent=1 // pred_fallthru
      _
    // Predicated region
    $region18: #{tpu_custom_call.1} parent=1 // pred_check
      _
    $region19: #{tpu_custom_call.1} parent=1 // pred_check_branch
      %22 = sbr.rel (0) target = $region21
    $region20: #{tpu_custom_call.1} parent=1 // pred_region
      _
    $region21: #{tpu_custom_call.1} parent=1 // pred_fallthru
      _
    // Predicated region
    $region22: #{tpu_custom_call.1} parent=1 // pred_check
      _
    $region23: #{tpu_custom_call.1} parent=1 // pred_check_branch
      %24 = sbr.rel (0) target = $region25
    $region24: #{tpu_custom_call.1} parent=1 // pred_region
      _
    $region25: #{tpu_custom_call.1} parent=1 // pred_fallthru
      _
    // Predicated region
    $region26: #{tpu_custom_call.1} parent=1 // pred_check
      _
    $region27: #{tpu_custom_call.1} parent=1 // pred_check_branch
      %26 = sbr.rel (0) target = $region29
    $region28: #{tpu_custom_call.1} parent=1 // pred_region
      _
    $region29: #{tpu_custom_call.1} parent=1 // pred_fallthru
      _
    %v27 = vld [vmem:[%s0] sm:$0xff]
    %v28 = vld [vmem:[%s0 + $0x8] sm:$0xff]
    %v29 = vld [vmem:[%s1] sm:$0xff]
    %v30 = vld [vmem:[%s1 + $0x8] sm:$0xff]
    %v31 = vld [vmem:[%s1 + $0x10] sm:$0xff]
    %v32 = vld [vmem:[%s2] sm:$0xff]
    %v33 = vld [vmem:[%s2 + $0x8] sm:$0xff]
    %v34 = vld [vmem:[%s2 + $0x10] sm:$0xff]
    %36 = vset.pattern.permute.xlu0 0
    %37 = vperm.xlu0 %36, %v32
    %v38 = vpop.permute.xlu0 %37
    %41 = vset.pattern.permute.xlu0 0
    %42 = vperm.xlu0 %41, %v33
    %v43 = vpop.permute.xlu0 %42
    %46 = vset.pattern.permute.xlu0 0
    %47 = vperm.xlu0 %46, %v34
    %v48 = vpop.permute.xlu0 %47
    %vm50 = vcmask 130048
    %v52 = vsel %vm50, %v29, 0
    %v55 = vsel %vm50, %v30, 0
    %v58 = vsel %vm50, %v31, 0
    %60 = vmatprep.subr.mxu0 0.0
    %61 = vmatpush1.msra.mxu0 0.0
    %62 = vmatprep.subr.mxu0 0.0
    %63 = vmatpush1.msra.mxu0 0.0
    %64 = vmatprep.subr.mxu0 0.0
    %65 = vmatpush1.msra.mxu0 0.0
    %66 = vmatprep.subr.mxu0 0.0
    %67 = vmatpush1.msra.mxu0 0.0
    %68 = vmatprep.subr.mxu0 0.0
    %69 = vmatpush1.msra.mxu0 0.0
    %70 = vmatprep.subr.mxu0 0.0
    %71 = vmatpush1.msra.mxu0 0.0
    %72 = vmatprep.subr.mxu0 0.0
    %73 = vmatpush1.msra.mxu0 0.0
    %74 = vmatprep.subr.mxu0 0.0
    %75 = vmatpush1.msra.mxu0 0.0
    %76 = vmatprep.subr.mxu0 0.0
    %77 = vmatpush1.msra.mxu0 0.0
    %78 = vmatprep.subr.mxu0 0.0
    %79 = vmatpush1.msra.mxu0 0.0
    %80 = vmatprep.subr.mxu0 0.0
    %81 = vmatpush1.msra.mxu0 0.0
    %82 = vmatprep.subr.mxu0 0.0
    %83 = vmatpush1.msra.mxu0 0.0
    %84 = vmatprep.subr.mxu0 0.0
    %85 = vmatpush1.msra.mxu0 0.0
    %86 = vmatprep.subr.mxu0 0.0
    %87 = vmatpush1.msra.mxu0 0.0
    %88 = vmatprep.subr.mxu0 0.0
    %89 = vmatpush1.msra.mxu0 %v28
    %90 = vmatprep.subr.mxu0 0.0
    %91 = vmatpush1.msra.mxu0 %v27
    %92 = vmatprep.subr.mxu0 0.0
    %93 = vmatpush2.msra.mxu0 0.0
    %94 = vmatprep.subr.mxu0 0.0
    %95 = vmatpush2.msra.mxu0 0.0
    %96 = vmatprep.subr.mxu0 0.0
    %97 = vmatpush2.msra.mxu0 0.0
    %98 = vmatprep.subr.mxu0 0.0
    %99 = vmatpush2.msra.mxu0 0.0
    %100 = vmatprep.subr.mxu0 0.0
    %101 = vmatpush2.msra.mxu0 0.0
    %102 = vmatprep.subr.mxu0 0.0
    %103 = vmatpush2.msra.mxu0 0.0
    %104 = vmatprep.subr.mxu0 0.0
    %105 = vmatpush2.msra.mxu0 0.0
    %106 = vmatprep.subr.mxu0 0.0
    %107 = vmatpush2.msra.mxu0 0.0
    %108 = vmatprep.subr.mxu0 0.0
    %109 = vmatpush2.msra.mxu0 0.0
    %110 = vmatprep.subr.mxu0 0.0
    %111 = vmatpush2.msra.mxu0 0.0
    %112 = vmatprep.subr.mxu0 0.0
    %113 = vmatpush2.msra.mxu0 0.0
    %114 = vmatprep.subr.mxu0 0.0
    %115 = vmatpush2.msra.mxu0 0.0
    %116 = vmatprep.subr.mxu0 0.0
    %117 = vmatpush2.msra.mxu0 0.0
    %118 = vmatprep.subr.mxu0 0.0
    %119 = vmatpush2.msra.mxu0 0.0
    %120 = vmatprep.subr.mxu0 0.0
    %121 = vmatpush2.msra.mxu0 0.0
    %122 = vmatprep.subr.mxu0 0.0
    %123 = vmatpush2.msra.mxu0 0.0
    %124 = vmatprep.mubr.f32.mxu0 0.0
    %125 = vmatmul.mubr.f32.gmra.mxu0 %v52
    %v126 = vpop.f32.mrf.mxu0
    %v127 = vadd.f32 %v38, %v126
    %v128 = vpop.f32.mrf.mxu0
    %129 = vmatprep.mubr.f32.mxu0 0.0
    %130 = vmatmul.mubr.f32.gmra.mxu0 %v55
    %v131 = vpop.f32.mrf.mxu0
    %v132 = vadd.f32 %v43, %v131
    %v133 = vpop.f32.mrf.mxu0
    %134 = vmatprep.mubr.f32.mxu0 0.0
    %135 = vmatmul.mubr.f32.gmra.mxu0 %v58
    %v136 = vpop.f32.mrf.mxu0
    %v137 = vadd.f32 %v48, %v136
    %v138 = vpop.f32.mrf.mxu0
    %139 = vdwg.mxu0
    %v140 = vmax.f32 %v127, 0.0
    %v141 = vmax.f32 %v132, 0.0
    %v142 = vmax.f32 %v137, 0.0
    %vm143 = vcmask 517120
    %144 = vst.msk [vmem:[#allocation2] sm:$0x3] %vm143, %v140
    %v147 = vunpack.c.l.s4 1983009808
    %v148 = vunpack.c.0.s8 %v147
    %v149 = vlaneseq
    %v150 = vshrl.u32 %v149, 7
    %v151 = vsub.s32 %v148, %v150
    %v152 = vrot.slane %v140, %v151
    %v153 = vcombine.high %v152, %v152
    %154 = vrot.lane.b32.xlu0 %v153, 64
    %v155 = vpop.permute.xlu0 %154
    %vm157 = vcmask 1041920
    %158 = vst.msk [vmem:[#allocation2] sm:$0x3] %vm157, %v155
    %v159 = vcombine.high %v140, %v140
    %v161 = vunpack.c.l.s4 1983009808
    %v162 = vunpack.c.0.s8 %v161
    %v163 = vlaneseq
    %v164 = vshrl.u32 %v163, 7
    %v165 = vsub.s32 %v162, %v164
    %v166 = vrot.slane %v159, %v165
    %168 = vst.msk [vmem:[#allocation2 + $0x2] sm:$0x3] %vm143, %v166
    %v169 = vcombine.high %v166, %v166
    %170 = vrot.lane.b32.xlu0 %v169, 64
    %v171 = vpop.permute.xlu0 %170
    %173 = vst.msk [vmem:[#allocation2 + $0x2] sm:$0x3] %vm157, %v171
    %174 = vst.msk [vmem:[#allocation2 + $0x4] sm:$0x3] %vm143, %v141
    %v177 = vunpack.c.l.s4 1983009808
    %v178 = vunpack.c.0.s8 %v177
    %v179 = vlaneseq
    %v180 = vshrl.u32 %v179, 7
    %v181 = vsub.s32 %v178, %v180
    %v182 = vrot.slane %v141, %v181
    %v183 = vcombine.high %v182, %v182
    %184 = vrot.lane.b32.xlu0 %v183, 64
    %v185 = vpop.permute.xlu0 %184
    %187 = vst.msk [vmem:[#allocation2 + $0x4] sm:$0x3] %vm157, %v185
    %v188 = vcombine.high %v141, %v141
    %v190 = vunpack.c.l.s4 1983009808
    %v191 = vunpack.c.0.s8 %v190
    %v192 = vlaneseq
    %v193 = vshrl.u32 %v192, 7
    %v194 = vsub.s32 %v191, %v193
    %v195 = vrot.slane %v188, %v194
    %197 = vst.msk [vmem:[#allocation2 + $0x6] sm:$0x3] %vm143, %v195
    %v198 = vcombine.high %v195, %v195
    %199 = vrot.lane.b32.xlu0 %v198, 64
    %v200 = vpop.permute.xlu0 %199
    %202 = vst.msk [vmem:[#allocation2 + $0x6] sm:$0x3] %vm157, %v200
    %203 = vst.msk [vmem:[#allocation2 + $0x8] sm:$0x3] %vm143, %v142
    %v206 = vunpack.c.l.s4 1983009808
    %v207 = vunpack.c.0.s8 %v206
    %v208 = vlaneseq
    %v209 = vshrl.u32 %v208, 7
    %v210 = vsub.s32 %v207, %v209
    %v211 = vrot.slane %v142, %v210
    %v212 = vcombine.high %v211, %v211
    %213 = vrot.lane.b32.xlu0 %v212, 64
    %v214 = vpop.permute.xlu0 %213
    %216 = vst.msk [vmem:[#allocation2 + $0x8] sm:$0x3] %vm157, %v214
    %v217 = vcombine.high %v142, %v142
    %v219 = vunpack.c.l.s4 1983009808
    %v220 = vunpack.c.0.s8 %v219
    %v221 = vlaneseq
    %v222 = vshrl.u32 %v221, 7
    %v223 = vsub.s32 %v220, %v222
    %v224 = vrot.slane %v217, %v223
    %226 = vst.msk [vmem:[#allocation2 + $0xa] sm:$0x3] %vm143, %v224
    %v227 = vcombine.high %v224, %v224
    %228 = vrot.lane.b32.xlu0 %v227, 64
    %v229 = vpop.permute.xlu0 %228
    %231 = vst.msk [vmem:[#allocation2 + $0xa] sm:$0x3] %vm157, %v229
    %v232 = vld [vmem:[#allocation2] sm:$0xff]
    %v233 = vld [vmem:[#allocation2 + $0x8] sm:$0xf]
    %v234 = vld [vmem:[%s3] sm:$0xff]
    %v235 = vld [vmem:[%s3 + $0x8] sm:$0xff]
    %v236 = vld [vmem:[%s3 + $0x10] sm:$0xff]
    %v237 = vld [vmem:[%s3 + $0x18] sm:$0xff]
    %v238 = vld [vmem:[%s3 + $0x20] sm:$0xff]
    %v239 = vld [vmem:[%s3 + $0x28] sm:$0xff]
    %v240 = vld [vmem:[%s3 + $0x30] sm:$0xff]
    %v241 = vld [vmem:[%s3 + $0x38] sm:$0xff]
    %v242 = vld [vmem:[%s3 + $0x40] sm:$0xff]
    %v243 = vld [vmem:[%s3 + $0x48] sm:$0xff]
    %v244 = vld [vmem:[%s3 + $0x50] sm:$0xff]
    %v245 = vld [vmem:[%s3 + $0x58] sm:$0xff]
    %v246 = vld [vmem:[%s3 + $0x60] sm:$0xff]
    %v247 = vld [vmem:[%s3 + $0x68] sm:$0xff]
    %v248 = vld [vmem:[%s3 + $0x70] sm:$0xff]
    %v249 = vld [vmem:[%s3 + $0x78] sm:$0xff]
    %v250 = vld [vmem:[%s3 + $0x80] sm:$0xff]
    %v251 = vld [vmem:[%s3 + $0x88] sm:$0xff]
    %v252 = vld [vmem:[%s3 + $0x90] sm:$0xff]
    %v253 = vld [vmem:[%s3 + $0x98] sm:$0xff]
    %v254 = vld [vmem:[%s3 + $0xa0] sm:$0xff]
    %v255 = vld [vmem:[%s3 + $0xa8] sm:$0xff]
    %v256 = vld [vmem:[%s3 + $0xb0] sm:$0xff]
    %v257 = vld [vmem:[%s3 + $0xb8] sm:$0xff]
    %v258 = vld [vmem:[%s3 + $0xc0] sm:$0xff]
    %v259 = vld [vmem:[%s3 + $0xc8] sm:$0xff]
    %v260 = vld [vmem:[%s3 + $0xd0] sm:$0xff]
    %v261 = vld [vmem:[%s3 + $0xd8] sm:$0xff]
    %v262 = vld [vmem:[%s3 + $0xe0] sm:$0xff]
    %v263 = vld [vmem:[%s3 + $0xe8] sm:$0xff]
    %v264 = vld [vmem:[%s3 + $0xf0] sm:$0xff]
    %v265 = vld [vmem:[%s3 + $0xf8] sm:$0xff]
    %v266 = vld [vmem:[%s3 + $0x100] sm:$0xff]
    %v267 = vld [vmem:[%s3 + $0x108] sm:$0xff]
    %v268 = vld [vmem:[%s3 + $0x110] sm:$0xff]
    %v269 = vld [vmem:[%s3 + $0x118] sm:$0xff]
    %v270 = vld [vmem:[%s3 + $0x120] sm:$0xff]
    %v271 = vld [vmem:[%s3 + $0x128] sm:$0xff]
    %v272 = vld [vmem:[%s3 + $0x130] sm:$0xff]
    %v273 = vld [vmem:[%s3 + $0x138] sm:$0xff]
    %v274 = vld [vmem:[%s3 + $0x140] sm:$0xff]
    %v275 = vld [vmem:[%s3 + $0x148] sm:$0xff]
    %v276 = vld [vmem:[%s3 + $0x150] sm:$0xff]
    %v277 = vld [vmem:[%s3 + $0x158] sm:$0xff]
    %v278 = vld [vmem:[%s3 + $0x160] sm:$0xff]
    %v279 = vld [vmem:[%s3 + $0x168] sm:$0xff]
    %v280 = vld [vmem:[%s3 + $0x170] sm:$0xff]
    %v281 = vld [vmem:[%s3 + $0x178] sm:$0xff]
    %v282 = vld [vmem:[%s3 + $0x180] sm:$0xff]
    %v283 = vld [vmem:[%s3 + $0x188] sm:$0xff]
    %v284 = vld [vmem:[%s3 + $0x190] sm:$0xff]
    %v285 = vld [vmem:[%s3 + $0x198] sm:$0xff]
    %v286 = vld [vmem:[%s3 + $0x1a0] sm:$0xff]
    %v287 = vld [vmem:[%s3 + $0x1a8] sm:$0xff]
    %v288 = vld [vmem:[%s3 + $0x1b0] sm:$0xff]
    %v289 = vld [vmem:[%s3 + $0x1b8] sm:$0xff]
    %v290 = vld [vmem:[%s3 + $0x1c0] sm:$0xff]
    %v291 = vld [vmem:[%s3 + $0x1c8] sm:$0xff]
    %v292 = vld [vmem:[%s3 + $0x1d0] sm:$0xff]
    %v293 = vld [vmem:[%s3 + $0x1d8] sm:$0xff]
    %v294 = vld [vmem:[%s3 + $0x1e0] sm:$0xff]
    %v295 = vld [vmem:[%s3 + $0x1e8] sm:$0xff]
    %v296 = vld [vmem:[%s3 + $0x1f0] sm:$0xff]
    %v297 = vld [vmem:[%s3 + $0x1f8] sm:$0xff]
    %v298 = vld [vmem:[%s3 + $0x200] sm:$0xff]
    %v299 = vld [vmem:[%s3 + $0x208] sm:$0xff]
    %v300 = vld [vmem:[%s3 + $0x210] sm:$0xff]
    %v301 = vld [vmem:[%s3 + $0x218] sm:$0xff]
    %v302 = vld [vmem:[%s3 + $0x220] sm:$0xff]
    %v303 = vld [vmem:[%s3 + $0x228] sm:$0xff]
    %v304 = vld [vmem:[%s3 + $0x230] sm:$0xff]
    %v305 = vld [vmem:[%s3 + $0x238] sm:$0xff]
    %v306 = vld [vmem:[%s3 + $0x240] sm:$0xff]
    %v307 = vld [vmem:[%s3 + $0x248] sm:$0xff]
    %v308 = vld [vmem:[%s3 + $0x250] sm:$0xff]
    %v309 = vld [vmem:[%s3 + $0x258] sm:$0xff]
    %v310 = vld [vmem:[%s3 + $0x260] sm:$0xff]
    %v311 = vld [vmem:[%s3 + $0x268] sm:$0xff]
    %v312 = vld [vmem:[%s3 + $0x270] sm:$0xff]
    %v313 = vld [vmem:[%s3 + $0x278] sm:$0xff]
    %v314 = vld [vmem:[%s3 + $0x280] sm:$0xff]
    %v315 = vld [vmem:[%s3 + $0x288] sm:$0xff]
    %v316 = vld [vmem:[%s3 + $0x290] sm:$0xff]
    %v317 = vld [vmem:[%s3 + $0x298] sm:$0xff]
    %v318 = vld [vmem:[%s3 + $0x2a0] sm:$0xff]
    %v319 = vld [vmem:[%s3 + $0x2a8] sm:$0xff]
    %v320 = vld [vmem:[%s3 + $0x2b0] sm:$0xff]
    %v321 = vld [vmem:[%s3 + $0x2b8] sm:$0xff]
    %v322 = vld [vmem:[%s3 + $0x2c0] sm:$0xff]
    %v323 = vld [vmem:[%s3 + $0x2c8] sm:$0xff]
    %v324 = vld [vmem:[%s3 + $0x2d0] sm:$0xff]
    %v325 = vld [vmem:[%s3 + $0x2d8] sm:$0xff]
    %v326 = vld [vmem:[%s3 + $0x2e0] sm:$0xff]
    %v327 = vld [vmem:[%s3 + $0x2e8] sm:$0xff]
    %v328 = vld [vmem:[%s3 + $0x2f0] sm:$0xff]
    %v329 = vld [vmem:[%s3 + $0x2f8] sm:$0xff]
    %v330 = vld [vmem:[%s4] sm:$0x1]
    %v332 = vlaneseq
    %v333 = vshrl.u32 %v332, 7
    %v334 = vsub.s32 0, %v333
    %v335 = vrot.slane %v330, %v334
    %v339 = vcombine.high %v232, %v232
    %v341 = vunpack.c.l.s4 1983009808
    %v342 = vunpack.c.0.s8 %v341
    %v343 = vlaneseq
    %v344 = vshrl.u32 %v343, 7
    %v345 = vsub.s32 %v342, %v344
    %v346 = vrot.slane %v232, %v345
    %v348 = vunpack.c.l.s4 1983009808
    %v349 = vunpack.c.0.s8 %v348
    %v350 = vlaneseq
    %v351 = vshrl.u32 %v350, 7
    %v352 = vsub.s32 %v349, %v351
    %v353 = vrot.slane %v339, %v352
    %v354 = vcombine.high %v346, %v346
    %v355 = vcombine.high %v353, %v353
    %v357 = vunpack.c.l.s4 1983009808
    %v358 = vunpack.c.0.s8 %v357
    %v359 = vlaneseq
    %v360 = vshrl.u32 %v359, 7
    %v361 = vsub.s32 %v358, %v360
    %v362 = vrot.slane %v233, %v361
    %v363 = vcombine.high %v362, %v362
    %370 = vmatprep.subr.mxu0 0.0
    %371 = vmatpush1.msra.mxu0 %v249
    %372 = vmatprep.subr.mxu0 0.0
    %373 = vmatpush1.msra.mxu0 %v248
    %374 = vmatprep.subr.mxu0 0.0
    %375 = vmatpush1.msra.mxu0 %v247
    %376 = vmatprep.subr.mxu0 0.0
    %377 = vmatpush1.msra.mxu0 %v246
    %378 = vmatprep.subr.mxu0 0.0
    %379 = vmatpush1.msra.mxu0 %v245
    %380 = vmatprep.subr.mxu0 0.0
    %381 = vmatpush1.msra.mxu0 %v244
    %382 = vmatprep.subr.mxu0 0.0
    %383 = vmatpush1.msra.mxu0 %v243
    %384 = vmatprep.subr.mxu0 0.0
    %385 = vmatpush1.msra.mxu0 %v242
    %386 = vmatprep.subr.mxu0 0.0
    %387 = vmatpush1.msra.mxu0 %v241
    %388 = vmatprep.subr.mxu0 0.0
    %389 = vmatpush1.msra.mxu0 %v240
    %390 = vmatprep.subr.mxu0 0.0
    %391 = vmatpush1.msra.mxu0 %v239
    %392 = vmatprep.subr.mxu0 0.0
    %393 = vmatpush1.msra.mxu0 %v238
    %394 = vmatprep.subr.mxu0 0.0
    %395 = vmatpush1.msra.mxu0 %v237
    %396 = vmatprep.subr.mxu0 0.0
    %397 = vmatpush1.msra.mxu0 %v236
    %398 = vmatprep.subr.mxu0 0.0
    %399 = vmatpush1.msra.mxu0 %v235
    %400 = vmatprep.subr.mxu0 0.0
    %401 = vmatpush1.msra.mxu0 %v234
    %402 = vmatprep.subr.mxu0 0.0
    %403 = vmatpush2.msra.mxu0 %v265
    %404 = vmatprep.subr.mxu0 0.0
    %405 = vmatpush2.msra.mxu0 %v264
    %406 = vmatprep.subr.mxu0 0.0
    %407 = vmatpush2.msra.mxu0 %v263
    %408 = vmatprep.subr.mxu0 0.0
    %409 = vmatpush2.msra.mxu0 %v262
    %410 = vmatprep.subr.mxu0 0.0
    %411 = vmatpush2.msra.mxu0 %v261
    %412 = vmatprep.subr.mxu0 0.0
    %413 = vmatpush2.msra.mxu0 %v260
    %414 = vmatprep.subr.mxu0 0.0
    %415 = vmatpush2.msra.mxu0 %v259
    %416 = vmatprep.subr.mxu0 0.0
    %417 = vmatpush2.msra.mxu0 %v258
    %418 = vmatprep.subr.mxu0 0.0
    %419 = vmatpush2.msra.mxu0 %v257
    %420 = vmatprep.subr.mxu0 0.0
    %421 = vmatpush2.msra.mxu0 %v256
    %422 = vmatprep.subr.mxu0 0.0
    %423 = vmatpush2.msra.mxu0 %v255
    %424 = vmatprep.subr.mxu0 0.0
    %425 = vmatpush2.msra.mxu0 %v254
    %426 = vmatprep.subr.mxu0 0.0
    %427 = vmatpush2.msra.mxu0 %v253
    %428 = vmatprep.subr.mxu0 0.0
    %429 = vmatpush2.msra.mxu0 %v252
    %430 = vmatprep.subr.mxu0 0.0
    %431 = vmatpush2.msra.mxu0 %v251
    %432 = vmatprep.subr.mxu0 0.0
    %433 = vmatpush2.msra.mxu0 %v250
    %434 = vmatprep.mubr.f32.mxu0 %v354
    %435 = vmatmul.mubr.f32.gmra.mxu0 %v346
    %v436 = vpop.f32.mrf.mxu0
    %v437 = vadd.f32 %v335, %v436
    %v438 = vpop.f32.mrf.mxu0
    %439 = vdwg.mxu0
    %440 = vmatprep.subr.mxu0 0.0
    %441 = vmatpush1.msra.mxu0 %v281
    %442 = vmatprep.subr.mxu0 0.0
    %443 = vmatpush1.msra.mxu0 %v280
    %444 = vmatprep.subr.mxu0 0.0
    %445 = vmatpush1.msra.mxu0 %v279
    %446 = vmatprep.subr.mxu0 0.0
    %447 = vmatpush1.msra.mxu0 %v278
    %448 = vmatprep.subr.mxu0 0.0
    %449 = vmatpush1.msra.mxu0 %v277
    %450 = vmatprep.subr.mxu0 0.0
    %451 = vmatpush1.msra.mxu0 %v276
    %452 = vmatprep.subr.mxu0 0.0
    %453 = vmatpush1.msra.mxu0 %v275
    %454 = vmatprep.subr.mxu0 0.0
    %455 = vmatpush1.msra.mxu0 %v274
    %456 = vmatprep.subr.mxu0 0.0
    %457 = vmatpush1.msra.mxu0 %v273
    %458 = vmatprep.subr.mxu0 0.0
    %459 = vmatpush1.msra.mxu0 %v272
    %460 = vmatprep.subr.mxu0 0.0
    %461 = vmatpush1.msra.mxu0 %v271
    %462 = vmatprep.subr.mxu0 0.0
    %463 = vmatpush1.msra.mxu0 %v270
    %464 = vmatprep.subr.mxu0 0.0
    %465 = vmatpush1.msra.mxu0 %v269
    %466 = vmatprep.subr.mxu0 0.0
    %467 = vmatpush1.msra.mxu0 %v268
    %468 = vmatprep.subr.mxu0 0.0
    %469 = vmatpush1.msra.mxu0 %v267
    %470 = vmatprep.subr.mxu0 0.0
    %471 = vmatpush1.msra.mxu0 %v266
    %472 = vmatprep.subr.mxu0 0.0
    %473 = vmatpush2.msra.mxu0 %v297
    %474 = vmatprep.subr.mxu0 0.0
    %475 = vmatpush2.msra.mxu0 %v296
    %476 = vmatprep.subr.mxu0 0.0
    %477 = vmatpush2.msra.mxu0 %v295
    %478 = vmatprep.subr.mxu0 0.0
    %479 = vmatpush2.msra.mxu0 %v294
    %480 = vmatprep.subr.mxu0 0.0
    %481 = vmatpush2.msra.mxu0 %v293
    %482 = vmatprep.subr.mxu0 0.0
    %483 = vmatpush2.msra.mxu0 %v292
    %484 = vmatprep.subr.mxu0 0.0
    %485 = vmatpush2.msra.mxu0 %v291
    %486 = vmatprep.subr.mxu0 0.0
    %487 = vmatpush2.msra.mxu0 %v290
    %488 = vmatprep.subr.mxu0 0.0
    %489 = vmatpush2.msra.mxu0 %v289
    %490 = vmatprep.subr.mxu0 0.0
    %491 = vmatpush2.msra.mxu0 %v288
    %492 = vmatprep.subr.mxu0 0.0
    %493 = vmatpush2.msra.mxu0 %v287
    %494 = vmatprep.subr.mxu0 0.0
    %495 = vmatpush2.msra.mxu0 %v286
    %496 = vmatprep.subr.mxu0 0.0
    %497 = vmatpush2.msra.mxu0 %v285
    %498 = vmatprep.subr.mxu0 0.0
    %499 = vmatpush2.msra.mxu0 %v284
    %500 = vmatprep.subr.mxu0 0.0
    %501 = vmatpush2.msra.mxu0 %v283
    %502 = vmatprep.subr.mxu0 0.0
    %503 = vmatpush2.msra.mxu0 %v282
    %504 = vmatprep.mubr.f32.mxu0 %v355
    %505 = vmatmul.mubr.f32.gmra.mxu0 %v353
    %v506 = vpop.f32.mrf.mxu0
    %v507 = vadd.f32 %v437, %v506
    %v508 = vpop.f32.mrf.mxu0
    %509 = vdwg.mxu0
    %510 = vmatprep.subr.mxu0 0.0
    %511 = vmatpush1.msra.mxu0 %v313
    %512 = vmatprep.subr.mxu0 0.0
    %513 = vmatpush1.msra.mxu0 %v312
    %514 = vmatprep.subr.mxu0 0.0
    %515 = vmatpush1.msra.mxu0 %v311
    %516 = vmatprep.subr.mxu0 0.0
    %517 = vmatpush1.msra.mxu0 %v310
    %518 = vmatprep.subr.mxu0 0.0
    %519 = vmatpush1.msra.mxu0 %v309
    %520 = vmatprep.subr.mxu0 0.0
    %521 = vmatpush1.msra.mxu0 %v308
    %522 = vmatprep.subr.mxu0 0.0
    %523 = vmatpush1.msra.mxu0 %v307
    %524 = vmatprep.subr.mxu0 0.0
    %525 = vmatpush1.msra.mxu0 %v306
    %526 = vmatprep.subr.mxu0 0.0
    %527 = vmatpush1.msra.mxu0 %v305
    %528 = vmatprep.subr.mxu0 0.0
    %529 = vmatpush1.msra.mxu0 %v304
    %530 = vmatprep.subr.mxu0 0.0
    %531 = vmatpush1.msra.mxu0 %v303
    %532 = vmatprep.subr.mxu0 0.0
    %533 = vmatpush1.msra.mxu0 %v302
    %534 = vmatprep.subr.mxu0 0.0
    %535 = vmatpush1.msra.mxu0 %v301
    %536 = vmatprep.subr.mxu0 0.0
    %537 = vmatpush1.msra.mxu0 %v300
    %538 = vmatprep.subr.mxu0 0.0
    %539 = vmatpush1.msra.mxu0 %v299
    %540 = vmatprep.subr.mxu0 0.0
    %541 = vmatpush1.msra.mxu0 %v298
    %542 = vmatprep.subr.mxu0 0.0
    %543 = vmatpush2.msra.mxu0 %v329
    %544 = vmatprep.subr.mxu0 0.0
    %545 = vmatpush2.msra.mxu0 %v328
    %546 = vmatprep.subr.mxu0 0.0
    %547 = vmatpush2.msra.mxu0 %v327
    %548 = vmatprep.subr.mxu0 0.0
    %549 = vmatpush2.msra.mxu0 %v326
    %550 = vmatprep.subr.mxu0 0.0
    %551 = vmatpush2.msra.mxu0 %v325
    %552 = vmatprep.subr.mxu0 0.0
    %553 = vmatpush2.msra.mxu0 %v324
    %554 = vmatprep.subr.mxu0 0.0
    %555 = vmatpush2.msra.mxu0 %v323
    %556 = vmatprep.subr.mxu0 0.0
    %557 = vmatpush2.msra.mxu0 %v322
    %558 = vmatprep.subr.mxu0 0.0
    %559 = vmatpush2.msra.mxu0 %v321
    %560 = vmatprep.subr.mxu0 0.0
    %561 = vmatpush2.msra.mxu0 %v320
    %562 = vmatprep.subr.mxu0 0.0
    %563 = vmatpush2.msra.mxu0 %v319
    %564 = vmatprep.subr.mxu0 0.0
    %565 = vmatpush2.msra.mxu0 %v318
    %566 = vmatprep.subr.mxu0 0.0
    %567 = vmatpush2.msra.mxu0 %v317
    %568 = vmatprep.subr.mxu0 0.0
    %569 = vmatpush2.msra.mxu0 %v316
    %570 = vmatprep.subr.mxu0 0.0
    %571 = vmatpush2.msra.mxu0 %v315
    %572 = vmatprep.subr.mxu0 0.0
    %573 = vmatpush2.msra.mxu0 %v314
    %574 = vmatprep.mubr.f32.mxu0 %v363
    %575 = vmatmul.mubr.f32.gmra.mxu0 %v362
    %v576 = vpop.f32.mrf.mxu0
    %v577 = vadd.f32 %v507, %v576
    %v578 = vpop.f32.mrf.mxu0
    %579 = vdwg.mxu0
    %v580 = vmax.f32 %v577, 0.0
    %v581 = vld [vmem:[%s5] sm:$0xff]
    %v582 = vld [vmem:[%s5 + $0x8] sm:$0xff]
    %v583 = vld [vmem:[%s5 + $0x10] sm:$0xff]
    %v584 = vld [vmem:[%s5 + $0x18] sm:$0xff]
    %v585 = vld [vmem:[%s6] sm:$0x1]
    %v587 = vlaneseq
    %v588 = vshrl.u32 %v587, 7
    %v589 = vsub.s32 0, %v588
    %v590 = vrot.slane %v585, %v589
    %vm592 = vcmask 261120
    %v594 = vsel %vm592, %v580, 0
    %596 = vmatprep.subr.mxu0 0.0
    %597 = vmatpush1.msra.mxu0 0.0
    %598 = vmatprep.subr.mxu0 0.0
    %599 = vmatpush1.msra.mxu0 0.0
    %600 = vmatprep.subr.mxu0 0.0
    %601 = vmatpush1.msra.mxu0 0.0
    %602 = vmatprep.subr.mxu0 0.0
    %603 = vmatpush1.msra.mxu0 0.0
    %604 = vmatprep.subr.mxu0 0.0
    %605 = vmatpush1.msra.mxu0 0.0
    %606 = vmatprep.subr.mxu0 0.0
    %607 = vmatpush1.msra.mxu0 0.0
    %608 = vmatprep.subr.mxu0 0.0
    %609 = vmatpush1.msra.mxu0 0.0
    %610 = vmatprep.subr.mxu0 0.0
    %611 = vmatpush1.msra.mxu0 0.0
    %612 = vmatprep.subr.mxu0 0.0
    %613 = vmatpush1.msra.mxu0 0.0
    %614 = vmatprep.subr.mxu0 0.0
    %615 = vmatpush1.msra.mxu0 0.0
    %616 = vmatprep.subr.mxu0 0.0
    %617 = vmatpush1.msra.mxu0 0.0
    %618 = vmatprep.subr.mxu0 0.0
    %619 = vmatpush1.msra.mxu0 0.0
    %620 = vmatprep.subr.mxu0 0.0
    %621 = vmatpush1.msra.mxu0 %v584
    %622 = vmatprep.subr.mxu0 0.0
    %623 = vmatpush1.msra.mxu0 %v583
    %624 = vmatprep.subr.mxu0 0.0
    %625 = vmatpush1.msra.mxu0 %v582
    %626 = vmatprep.subr.mxu0 0.0
    %627 = vmatpush1.msra.mxu0 %v581
    %628 = vmatprep.subr.mxu0 0.0
    %629 = vmatpush2.msra.mxu0 0.0
    %630 = vmatprep.subr.mxu0 0.0
    %631 = vmatpush2.msra.mxu0 0.0
    %632 = vmatprep.subr.mxu0 0.0
    %633 = vmatpush2.msra.mxu0 0.0
    %634 = vmatprep.subr.mxu0 0.0
    %635 = vmatpush2.msra.mxu0 0.0
    %636 = vmatprep.subr.mxu0 0.0
    %637 = vmatpush2.msra.mxu0 0.0
    %638 = vmatprep.subr.mxu0 0.0
    %639 = vmatpush2.msra.mxu0 0.0
    %640 = vmatprep.subr.mxu0 0.0
    %641 = vmatpush2.msra.mxu0 0.0
    %642 = vmatprep.subr.mxu0 0.0
    %643 = vmatpush2.msra.mxu0 0.0
    %644 = vmatprep.subr.mxu0 0.0
    %645 = vmatpush2.msra.mxu0 0.0
    %646 = vmatprep.subr.mxu0 0.0
    %647 = vmatpush2.msra.mxu0 0.0
    %648 = vmatprep.subr.mxu0 0.0
    %649 = vmatpush2.msra.mxu0 0.0
    %650 = vmatprep.subr.mxu0 0.0
    %651 = vmatpush2.msra.mxu0 0.0
    %652 = vmatprep.subr.mxu0 0.0
    %653 = vmatpush2.msra.mxu0 0.0
    %654 = vmatprep.subr.mxu0 0.0
    %655 = vmatpush2.msra.mxu0 0.0
    %656 = vmatprep.subr.mxu0 0.0
    %657 = vmatpush2.msra.mxu0 0.0
    %658 = vmatprep.subr.mxu0 0.0
    %659 = vmatpush2.msra.mxu0 0.0
    %660 = vmatprep.mubr.f32.mxu0 0.0
    %661 = vmatmul.mubr.f32.gmra.mxu0 %v594
    %v662 = vpop.f32.mrf.mxu0
    %v663 = vadd.f32 %v590, %v662
    %v664 = vpop.f32.mrf.mxu0
    %665 = vdwg.mxu0
    %vm666 = vcmask 17408
    %v667 = vsel %vm666, %v663, -inf
    %668 = vmax.xlane.f32.xlu0 %v667
    %v669 = vpop.xlane.xlu0 %668
    %v670 = vsub.f32 %v663, %v669
    %v671 = vmul.f32 %v670, 1.442695
    %v672 = vpow.pop %v671
    %v673 = vsel %vm666, %v672, 0.0
    %674 = vadd.xlane.f32.xlu0 %v673
    %v675 = vpop.xlane.xlu0 %674
    %v676 = vlog2.pop %v675
    %v677 = vmul.f32 %v676, 0.6931472
    %v678 = vadd.f32 %v669, %v677
    %v679 = vsub.f32 %v663, %v678
    %680 = vst.msk [vmem:[#allocation3] sm:$0x3] %vm666, %v679
    // Predicated region
    $region30: #{tpu_custom_call.1} parent=1 // pred_check
      _
    $region31: #{tpu_custom_call.1} parent=1 // pred_check_branch
      %682 = sbr.rel (0) target = $region33
    $region32: #{tpu_custom_call.1} parent=1 // pred_region
      %s684 = ssub.s32 32, 32
      %685 = vsyncadd [#allocation4], %s684
      %s687 = sshll.u32 [#allocation3], 4
      %s688 = int_to_ptr.vmem [resolvable:$true] %s687
      %690 = dma.vmem_to_hbm [thread:$0]  %s688, 32, %s7, [#allocation4]
    $region33: #{tpu_custom_call.1} parent=1 // pred_fallthru
      _
    // Predicated region
    $region34: #{tpu_custom_call.1} parent=1 // pred_check
      _
    $region35: #{tpu_custom_call.1} parent=1 // pred_check_branch
      %692 = sbr.rel (0) target = $region37
    $region36: #{tpu_custom_call.1} parent=1 // pred_region
      %693 = dma.done [#allocation4], 32
    $region37: #{tpu_custom_call.1} parent=1 // pred_fallthru
      _
    %694 = vsyncpa [#allocation4], 1

</llo_original>
